<compile_context>
chip_gen: v5e
topology: v5e:2x2
jax: 0.10.0
libtpu: 0.0.40
codegen_flags: <defaults>
</compile_context>

<pallas_src>
import jax
import jax.numpy as jnp
from jax import lax
from jax.experimental import pallas as pl
from jax.experimental.pallas import tpu as pltpu


def sae_kernel(x_ref, w1_ref, b1_ref, w2_ref, b2_ref, lat_ref, rec_ref):
    # Encoder: x [TB, In] @ W1^T ([Mid, In], contracted on last dims) -> [TB, Mid]
    x = x_ref[...]
    h = lax.dot_general(
        x, w1_ref[...],
        dimension_numbers=(((1,), (1,)), ((), ())),
        preferred_element_type=jnp.float32,
    )
    lat = jnp.maximum(h + b1_ref[...], 0.0)
    lat_ref[...] = lat.astype(lat_ref.dtype)

    # Decoder: lat [TB, Mid] @ W2^T ([Out, Mid], contracted on last dims) -> [TB, Out]
    r = lax.dot_general(
        lat.astype(w2_ref.dtype), w2_ref[...],
        dimension_numbers=(((1,), (1,)), ((), ())),
        preferred_element_type=jnp.float32,
    )
    rec_ref[...] = jnp.maximum(r + b2_ref[...], 0.0).astype(rec_ref.dtype)


def _round_up(x, m):
    return ((x + m - 1) // m) * m


def my_sae_forward(x, w1, b1, w2, b2, *, max_tile=512,
                   vmem_limit_bytes=64 * 1024 * 1024):
    """x: [B, In]; w1: [Mid, In]; b1: [Mid]; w2: [Out, Mid]; b2: [Out].

    Weights stay in PyTorch nn.Linear layout ([out_features, in_features]);
    the kernel contracts on the last dims so no transpose is materialized.
    Returns (latent [B, Mid], reconstruction [B, Out]).
    """
    B, In = x.shape
    Mid = w1.shape[0]
    Out = w2.shape[0]
    dtype = x.dtype
    itemsize = jnp.dtype(dtype).itemsize

    # --- pick a batch tile: multiple of 8 (sublanes), capped, VMEM-budgeted ---
    def tile_bytes(tb):
        io = 2 * tb * (In + Mid + Out) * itemsize            # double-buffered x/lat/rec tiles
        w = 2 * (In * Mid + Mid * Out + Mid + Out) * itemsize  # resident weights/biases (x2 buffers)
        return io + w

    budget = vmem_limit_bytes - 8 * 1024 * 1024  # leave headroom for scratch/spills
    TB = min(_round_up(B, 8), max_tile)
    while TB > 8 and tile_bytes(TB) > budget:
        TB = max(8, ((TB // 2) // 8) * 8)

    # --- pad batch to a multiple of TB so block shapes are legal ---
    B_pad = _round_up(B, TB)
    if B_pad != B:
        x = jnp.pad(x, ((0, B_pad - B), (0, 0)))

    # 2-D biases for TPU-friendly broadcast (cheap reshape, tiny arrays).
    b1_2d = b1.reshape(1, Mid)
    b2_2d = b2.reshape(1, Out)

    grid = (pl.cdiv(B_pad, TB),)

    lat, rec = pl.pallas_call(
        sae_kernel,
        out_shape=(
            jax.ShapeDtypeStruct((B_pad, Mid), dtype),
            jax.ShapeDtypeStruct((B_pad, Out), dtype),
        ),
        grid=grid,
        in_specs=[
            pl.BlockSpec((TB, In), lambda i: (i, 0)),     # x: tiled over batch
            pl.BlockSpec((Mid, In), lambda i: (0, 0)),    # W1: VMEM-resident
            pl.BlockSpec((1, Mid), lambda i: (0, 0)),     # b1: VMEM-resident
            pl.BlockSpec((Out, Mid), lambda i: (0, 0)),   # W2: VMEM-resident
            pl.BlockSpec((1, Out), lambda i: (0, 0)),     # b2: VMEM-resident
        ],
        out_specs=(
            pl.BlockSpec((TB, Mid), lambda i: (i, 0)),
            pl.BlockSpec((TB, Out), lambda i: (i, 0)),
        ),
        compiler_params=pltpu.CompilerParams(
            dimension_semantics=("parallel",),
            vmem_limit_bytes=vmem_limit_bytes,
        ),
    )(x, w1, b1_2d, w2, b2_2d)

    if B_pad != B:
        lat = lat[:B]
        rec = rec[:B]
    return lat, rec


def reference_forward(x, w1, b1, w2, b2):
    lat = jnp.maximum(x @ w1.T + b1, 0.0)
    rec = jnp.maximum(lat @ w2.T + b2, 0.0)
    return lat, rec


if __name__ == "__main__":
    # Small shapes implied by the module: Input_Dim=16, Middle_Dim=32, Output_Dim=16
    B, In, Mid, Out = 8, 16, 32, 16

    key = jax.random.PRNGKey(0)
    kx, kw1, kb1, kw2, kb2 = jax.random.split(key, 5)

    x = jax.random.normal(kx, (B, In), dtype=jnp.float32)
    # Deterministic synthetic parameters (PyTorch nn.Linear shapes: [out, in])
    w1 = jax.random.uniform(kw1, (Mid, In), dtype=jnp.float32,
                            minval=-1.0 / In ** 0.5, maxval=1.0 / In ** 0.5)
    b1 = jax.random.uniform(kb1, (Mid,), dtype=jnp.float32,
                            minval=-1.0 / In ** 0.5, maxval=1.0 / In ** 0.5)
    w2 = jax.random.uniform(kw2, (Out, Mid), dtype=jnp.float32,
                            minval=-1.0 / Mid ** 0.5, maxval=1.0 / Mid ** 0.5)
    b2 = jax.random.uniform(kb2, (Mid,), dtype=jnp.float32,
                            minval=-1.0 / Mid ** 0.5, maxval=1.0 / Mid ** 0.5)[:Out]

    # --- test 1: plain call (single tile) ---
    lat, rec = my_sae_forward(x, w1, b1, w2, b2)
    jax.block_until_ready((lat, rec))
    lat_ref, rec_ref = reference_forward(x, w1, b1, w2, b2)
    assert lat.shape == (B, Mid) and rec.shape == (B, Out)
    assert jnp.allclose(lat, lat_ref, atol=1e-5, rtol=1e-5)
    assert jnp.allclose(rec, rec_ref, atol=1e-5, rtol=1e-5)

    # --- test 2: exercise multi-tile grid + batch padding (B not multiple of TB) ---
    B2 = 40
    x2 = jax.random.normal(jax.random.PRNGKey(1), (B2, In), dtype=jnp.float32)
    lat2, rec2 = my_sae_forward(x2, w1, b1, w2, b2, max_tile=16)
    jax.block_until_ready((lat2, rec2))
    lat2_ref, rec2_ref = reference_forward(x2, w1, b1, w2, b2)
    assert lat2.shape == (B2, Mid) and rec2.shape == (B2, Out)
    assert jnp.allclose(lat2, lat2_ref, atol=1e-5, rtol=1e-5)
    assert jnp.allclose(rec2, rec2_ref, atol=1e-5, rtol=1e-5)

    print("KERNEL_OK")
</pallas_src>

<mosaic_0001>
module attributes {stable_mosaic.version = 11 : i64} {
  func.func @sae_kernel(%arg0: i32, %arg1: memref<8x16xf32, #tpu.memory_space<vmem>>, %arg2: memref<32x16xf32, #tpu.memory_space<vmem>>, %arg3: memref<1x32xf32, #tpu.memory_space<vmem>>, %arg4: memref<16x32xf32, #tpu.memory_space<vmem>>, %arg5: memref<1x16xf32, #tpu.memory_space<vmem>>, %arg6: memref<8x32xf32, #tpu.memory_space<vmem>>, %arg7: memref<8x16xf32, #tpu.memory_space<vmem>>) attributes {dimension_semantics = [#tpu.dimension_semantics<parallel>], iteration_bounds = array<i64: 1>, scalar_prefetch = 0 : i64, scratch_operands = 0 : i64, tpu.core_type = #tpu.core_type<tc>, window_params = [{transform_indices = @transform_0, window_bounds = array<i64: 8, 16>}, {pipeline_mode = #tpu.pipeline_mode<synchronous>, transform_indices = @transform_1, window_bounds = array<i64: 32, 16>}, {pipeline_mode = #tpu.pipeline_mode<synchronous>, transform_indices = @transform_2, window_bounds = array<i64: 1, 32>}, {pipeline_mode = #tpu.pipeline_mode<synchronous>, transform_indices = @transform_3, window_bounds = array<i64: 16, 32>}, {pipeline_mode = #tpu.pipeline_mode<synchronous>, transform_indices = @transform_4, window_bounds = array<i64: 1, 16>}, {transform_indices = @transform_5, window_bounds = array<i64: 8, 32>}, {transform_indices = @transform_6, window_bounds = array<i64: 8, 16>}]} {
    %c0 = arith.constant 0 : index
    %c0_0 = arith.constant 0 : index
    %0 = vector.load %arg1[%c0, %c0_0] : memref<8x16xf32, #tpu.memory_space<vmem>>, vector<8x16xf32>
    %c0_1 = arith.constant 0 : index
    %c0_2 = arith.constant 0 : index
    %1 = vector.load %arg2[%c0_1, %c0_2] : memref<32x16xf32, #tpu.memory_space<vmem>>, vector<32x16xf32>
    %cst = arith.constant dense<0.000000e+00> : vector<8x32xf32>
    %2 = tpu.matmul %0, %1, %cst {dimension_numbers = #tpu.dot_dimension_numbers<[1], [1], [0], [0], [0, 0, 1, 0], [], []>} : vector<8x16xf32>, vector<32x16xf32>, vector<8x32xf32> -> vector<8x32xf32>
    %c0_3 = arith.constant 0 : index
    %c0_4 = arith.constant 0 : index
    %3 = vector.load %arg3[%c0_3, %c0_4] : memref<1x32xf32, #tpu.memory_space<vmem>>, vector<1x32xf32>
    %4 = vector.broadcast %3 : vector<1x32xf32> to vector<8x32xf32>
    %5 = arith.addf %2, %4 : vector<8x32xf32>
    %cst_5 = arith.constant 0.000000e+00 : f32
    %6 = vector.broadcast %cst_5 : f32 to vector<8x32xf32>
    %7 = arith.maximumf %5, %6 : vector<8x32xf32>
    %c0_6 = arith.constant 0 : index
    %c0_7 = arith.constant 0 : index
    %8 = vector.load %arg6[%c0_6, %c0_7] : memref<8x32xf32, #tpu.memory_space<vmem>>, vector<8x32xf32>
    tpu.vector_store %arg6[%c0_6, %c0_7], %7 {strides = array<i32>} : memref<8x32xf32, #tpu.memory_space<vmem>>, vector<8x32xf32>,
    %c0_8 = arith.constant 0 : index
    %c0_9 = arith.constant 0 : index
    %9 = vector.load %arg4[%c0_8, %c0_9] : memref<16x32xf32, #tpu.memory_space<vmem>>, vector<16x32xf32>
    %cst_10 = arith.constant dense<0.000000e+00> : vector<8x16xf32>
    %10 = tpu.matmul %7, %9, %cst_10 {dimension_numbers = #tpu.dot_dimension_numbers<[1], [1], [0], [0], [0, 0, 1, 0], [], []>} : vector<8x32xf32>, vector<16x32xf32>, vector<8x16xf32> -> vector<8x16xf32>
    %c0_11 = arith.constant 0 : index
    %c0_12 = arith.constant 0 : index
    %11 = vector.load %arg5[%c0_11, %c0_12] : memref<1x16xf32, #tpu.memory_space<vmem>>, vector<1x16xf32>
    %12 = vector.broadcast %11 : vector<1x16xf32> to vector<8x16xf32>
    %13 = arith.addf %10, %12 : vector<8x16xf32>
    %cst_13 = arith.constant 0.000000e+00 : f32
    %14 = vector.broadcast %cst_13 : f32 to vector<8x16xf32>
    %15 = arith.maximumf %13, %14 : vector<8x16xf32>
    %c0_14 = arith.constant 0 : index
    %c0_15 = arith.constant 0 : index
    %16 = vector.load %arg7[%c0_14, %c0_15] : memref<8x16xf32, #tpu.memory_space<vmem>>, vector<8x16xf32>
    tpu.vector_store %arg7[%c0_14, %c0_15], %15 {strides = array<i32>} : memref<8x16xf32, #tpu.memory_space<vmem>>, vector<8x16xf32>,
    return
  }
  func.func @transform_0(%arg0: i32) -> (i32, i32) {
    %c0_i32 = arith.constant 0 : i32
    %c0_i32_0 = arith.constant 0 : i32
    return %arg0, %c0_i32 : i32, i32
  }
  func.func @transform_1(%arg0: i32) -> (i32, i32) {
    %c0_i32 = arith.constant 0 : i32
    %c0_i32_0 = arith.constant 0 : i32
    %c0_i32_1 = arith.constant 0 : i32
    return %c0_i32, %c0_i32_0 : i32, i32
  }
  func.func @transform_2(%arg0: i32) -> (i32, i32) {
    %c0_i32 = arith.constant 0 : i32
    %c0_i32_0 = arith.constant 0 : i32
    %c0_i32_1 = arith.constant 0 : i32
    return %c0_i32, %c0_i32_0 : i32, i32
  }
  func.func @transform_3(%arg0: i32) -> (i32, i32) {
    %c0_i32 = arith.constant 0 : i32
    %c0_i32_0 = arith.constant 0 : i32
    %c0_i32_1 = arith.constant 0 : i32
    return %c0_i32, %c0_i32_0 : i32, i32
  }
  func.func @transform_4(%arg0: i32) -> (i32, i32) {
    %c0_i32 = arith.constant 0 : i32
    %c0_i32_0 = arith.constant 0 : i32
    %c0_i32_1 = arith.constant 0 : i32
    return %c0_i32, %c0_i32_0 : i32, i32
  }
  func.func @transform_5(%arg0: i32) -> (i32, i32) {
    %c0_i32 = arith.constant 0 : i32
    %c0_i32_0 = arith.constant 0 : i32
    return %arg0, %c0_i32 : i32, i32
  }
  func.func @transform_6(%arg0: i32) -> (i32, i32) {
    %c0_i32 = arith.constant 0 : i32
    %c0_i32_0 = arith.constant 0 : i32
    return %arg0, %c0_i32 : i32, i32
  }
}

</mosaic_0001>

<llo_original>
// kernel: tpu_custom_call.1
$region0: #{tpu_custom_call.1}
  #allocation0 [shape = 'u32[]', space=smem, size = 0x4, offset = 0x4, fixed_abs, tag = 'smem constant byte address 0x4 - core index']
  #allocation1 [shape = 'u32[72,128]{1,0:T(1,128)}', space=vmem, size = 0x9000, scoped, tag = 'internal scratch']
  %s0 = inlined_call_operand.vmem [shape: f32[8,16], index: 0, kind: input, shape index: {}]
  %s1 = inlined_call_operand.vmem [shape: f32[32,16], index: 1, kind: input, shape index: {}]
  %s2 = inlined_call_operand.vmem [shape: f32[1,32], index: 2, kind: input, shape index: {}]
  %s3 = inlined_call_operand.vmem [shape: f32[16,32], index: 3, kind: input, shape index: {}]
  %s4 = inlined_call_operand.vmem [shape: f32[1,16], index: 4, kind: input, shape index: {}]
  %s5 = inlined_call_operand.hbm [shape: f32[8,32], index: 5, kind: output, shape index: {0}]
  %s6 = inlined_call_operand.hbm [shape: f32[8,16], index: 6, kind: output, shape index: {1}]
  %7 = xla_tuple %s5, %s6
  %s8 = sld [smem:[#allocation0]]
  $region38: #{tpu_custom_call.1} parent=0
    _
  %s10 = ssub.s32 1, %s8
  %s11 = scalar_select 0, %s10, %s8
  $region1: #{tpu_custom_call.1} parent=0
    #allocation2 [shape = 'u8[4096]{0}', space=vmem, size = 0x1000, scoped, tag = 'output window, operand 0, single buffered']
    #allocation3 [shape = 's32[1]{0}', space=sflag, size = 0x4, scoped, tag = 'scoped memory for tpu_custom_call.1']
    #allocation4 [shape = 'u8[4096]{0}', space=vmem, size = 0x1000, scoped, tag = 'output window, operand 1, single buffered']
    #allocation5 [shape = 's32[1]{0}', space=sflag, size = 0x4, scoped, tag = 'scoped memory for tpu_custom_call.1']
    %12 = vsyncpa [#allocation3], 0
    %13 = vsyncpa [#allocation5], 0
    // Predicated region
    $region2: #{tpu_custom_call.1} parent=1 // pred_check
      _
    $region3: #{tpu_custom_call.1} parent=1 // pred_check_branch
      %15 = sbr.rel (0) target = $region5
    $region4: #{tpu_custom_call.1} parent=1 // pred_region
      _
    $region5: #{tpu_custom_call.1} parent=1 // pred_fallthru
      _
    // Predicated region
    $region6: #{tpu_custom_call.1} parent=1 // pred_check
      _
    $region7: #{tpu_custom_call.1} parent=1 // pred_check_branch
      %17 = sbr.rel (0) target = $region9
    $region8: #{tpu_custom_call.1} parent=1 // pred_region
      _
    $region9: #{tpu_custom_call.1} parent=1 // pred_fallthru
      _
    // Predicated region
    $region10: #{tpu_custom_call.1} parent=1 // pred_check
      _
    $region11: #{tpu_custom_call.1} parent=1 // pred_check_branch
      %19 = sbr.rel (0) target = $region13
    $region12: #{tpu_custom_call.1} parent=1 // pred_region
      _
    $region13: #{tpu_custom_call.1} parent=1 // pred_fallthru
      _
    // Predicated region
    $region14: #{tpu_custom_call.1} parent=1 // pred_check
      _
    $region15: #{tpu_custom_call.1} parent=1 // pred_check_branch
      %21 = sbr.rel (0) target = $region17
    $region16: #{tpu_custom_call.1} parent=1 // pred_region
      _
    $region17: #{tpu_custom_call.1} parent=1 // pred_fallthru
      _
    // Predicated region
    $region18: #{tpu_custom_call.1} parent=1 // pred_check
      _
    $region19: #{tpu_custom_call.1} parent=1 // pred_check_branch
      %23 = sbr.rel (0) target = $region21
    $region20: #{tpu_custom_call.1} parent=1 // pred_region
      _
    $region21: #{tpu_custom_call.1} parent=1 // pred_fallthru
      _
    %v24 = vld [vmem:[%s0] sm:$0xff]
    %v25 = vld [vmem:[%s1] sm:$0xff]
    %v26 = vld [vmem:[%s1 + $0x8] sm:$0xff]
    %v27 = vld [vmem:[%s1 + $0x10] sm:$0xff]
    %v28 = vld [vmem:[%s1 + $0x18] sm:$0xff]
    %v29 = vld [vmem:[%s2] sm:$0x1]
    %v31 = vperm.slane %v29, 0
    %vm33 = vcmask 130048
    %v35 = vsel %vm33, %v24, 0
    %v38 = vsel %vm33, %v25, 0
    %v41 = vsel %vm33, %v26, 0
    %v44 = vsel %vm33, %v27, 0
    %v47 = vsel %vm33, %v28, 0
    %49 = vmatpush.xpose.msra.mxu0 0.0
    %50 = vmatpush.xpose.msra.mxu0 0.0
    %51 = vmatpush.xpose.msra.mxu0 0.0
    %52 = vmatpush.xpose.msra.mxu0 0.0
    %53 = vmatpush.xpose.msra.mxu0 0.0
    %54 = vmatpush.xpose.msra.mxu0 0.0
    %55 = vmatpush.xpose.msra.mxu0 0.0
    %56 = vmatpush.xpose.msra.mxu0 0.0
    %57 = vmatpush.xpose.msra.mxu0 0.0
    %58 = vmatpush.xpose.msra.mxu0 0.0
    %59 = vmatpush.xpose.msra.mxu0 0.0
    %60 = vmatpush.xpose.msra.mxu0 0.0
    %61 = vmatpush.xpose.msra.mxu0 %v47
    %62 = vmatpush.xpose.msra.mxu0 %v44
    %63 = vmatpush.xpose.msra.mxu0 %v41
    %64 = vmatpush.xpose.msra.mxu0 %v38
    %65 = vmatmul.f32.gmra.mxu0 %v35
    %v66 = vpop.f32.mrf.mxu0
    %v67 = vadd.f32 %v31, %v66
    %68 = vdwg.mxu0
    %v69 = vmax.f32 %v67, 0.0
    %vm70 = vcmask 261120
    %71 = vst.msk [vmem:[#allocation2] sm:$0xff] %vm70, %v69
    %v72 = vld [vmem:[%s3] sm:$0xff]
    %v73 = vld [vmem:[%s3 + $0x8] sm:$0xff]
    %v74 = vld [vmem:[%s4] sm:$0x1]
    %v76 = vperm.slane %v74, 0
    %v79 = vsel %vm70, %v69, 0
    %v82 = vsel %vm70, %v72, 0
    %v85 = vsel %vm70, %v73, 0
    %87 = vmatpush.xpose.msra.mxu0 0.0
    %88 = vmatpush.xpose.msra.mxu0 0.0
    %89 = vmatpush.xpose.msra.mxu0 0.0
    %90 = vmatpush.xpose.msra.mxu0 0.0
    %91 = vmatpush.xpose.msra.mxu0 0.0
    %92 = vmatpush.xpose.msra.mxu0 0.0
    %93 = vmatpush.xpose.msra.mxu0 0.0
    %94 = vmatpush.xpose.msra.mxu0 0.0
    %95 = vmatpush.xpose.msra.mxu0 0.0
    %96 = vmatpush.xpose.msra.mxu0 0.0
    %97 = vmatpush.xpose.msra.mxu0 0.0
    %98 = vmatpush.xpose.msra.mxu0 0.0
    %99 = vmatpush.xpose.msra.mxu0 0.0
    %100 = vmatpush.xpose.msra.mxu0 0.0
    %101 = vmatpush.xpose.msra.mxu0 %v85
    %102 = vmatpush.xpose.msra.mxu0 %v82
    %103 = vmatmul.f32.gmra.mxu0 %v79
    %v104 = vpop.f32.mrf.mxu0
    %v105 = vadd.f32 %v76, %v104
    %106 = vdwg.mxu0
    %v107 = vmax.f32 %v105, 0.0
    %108 = vst.msk [vmem:[#allocation4] sm:$0xff] %vm33, %v107
    // Predicated region
    $region22: #{tpu_custom_call.1} parent=1 // pred_check
      _
    $region23: #{tpu_custom_call.1} parent=1 // pred_check_branch
      %110 = sbr.rel (0) target = $region25
    $region24: #{tpu_custom_call.1} parent=1 // pred_region
      %112 = vsyncadd [#allocation3], 0
      %s114 = sshll.u32 [#allocation2], 4
      %s115 = int_to_ptr.vmem [resolvable:$true] %s114
      %s116 = sshll.u32 %s5, 4
      %s117 = int_to_ptr.hbm [resolvable:$true] %s116
      %119 = dma.vmem_to_hbm [thread:$0]  %s115, 128, %s117, [#allocation3]
    $region25: #{tpu_custom_call.1} parent=1 // pred_fallthru
      _
    // Predicated region
    $region26: #{tpu_custom_call.1} parent=1 // pred_check
      _
    $region27: #{tpu_custom_call.1} parent=1 // pred_check_branch
      %121 = sbr.rel (0) target = $region29
    $region28: #{tpu_custom_call.1} parent=1 // pred_region
      %123 = vsyncadd [#allocation5], 0
      %s125 = sshll.u32 [#allocation4], 4
      %s126 = int_to_ptr.vmem [resolvable:$true] %s125
      %s127 = sshll.u32 %s6, 4
      %s128 = int_to_ptr.hbm [resolvable:$true] %s127
      %130 = dma.vmem_to_hbm [thread:$0]  %s126, 128, %s128, [#allocation5]
    $region29: #{tpu_custom_call.1} parent=1 // pred_fallthru
      _
    // Predicated region
    $region30: #{tpu_custom_call.1} parent=1 // pred_check
      _
    $region31: #{tpu_custom_call.1} parent=1 // pred_check_branch
      %132 = sbr.rel (0) target = $region33
    $region32: #{tpu_custom_call.1} parent=1 // pred_region
      %134 = dma.done [#allocation3], 128
    $region33: #{tpu_custom_call.1} parent=1 // pred_fallthru
      _
    // Predicated region
    $region34: #{tpu_custom_call.1} parent=1 // pred_check
      _
    $region35: #{tpu_custom_call.1} parent=1 // pred_check_branch
      %136 = sbr.rel (0) target = $region37
    $region36: #{tpu_custom_call.1} parent=1 // pred_region
      %138 = dma.done [#allocation5], 128
    $region37: #{tpu_custom_call.1} parent=1 // pred_fallthru
      _
    %139 = vsyncpa [#allocation3], 1
    %140 = vsyncpa [#allocation5], 1

</llo_original>
